<compile_context>
chip_gen: v6e
topology: v6e:2x2x1
jax: 0.10.0
libtpu: 0.0.40
codegen_flags: <defaults>
</compile_context>

<pallas_src>
import jax
import jax.numpy as jnp
from jax.experimental import pallas as pl
from jax.experimental.pallas import tpu as pltpu


# ---------------------------------------------------------------------------
# Pallas kernel: apply precomputed per-axis keep vectors to one (l_blk, F, t_blk) tile.
# ---------------------------------------------------------------------------
def _specaug_kernel(keep_f_ref, keep_t_ref, x_ref, o_ref):
    # keep_f_ref: (F, 1) f32, 1.0 = keep / 0.0 = mask (frequency axis, whole array)
    # keep_t_ref: (1, t_blk) f32, same for this tile's slice of the time axis
    # x_ref / o_ref: (l_blk, F, t_blk)
    x = x_ref[...]
    keep = (keep_f_ref[...] != 0.0) & (keep_t_ref[...] != 0.0)  # (F, t_blk) via broadcast
    # jnp.where (not multiply) so masked NaN/Inf become exactly 0.0 like masked_fill.
    o_ref[...] = jnp.where(keep, x, jnp.zeros((), x.dtype))


# ---------------------------------------------------------------------------
# Tiling helpers.
# ---------------------------------------------------------------------------
def _round_up(x, m):
    return ((x + m - 1) // m) * m


def _vmem_capacity_bytes():
    """Per-TensorCore VMEM for generation-aware tiling; conservative fallback."""
    try:
        info = pltpu.get_tpu_info()
        cap = getattr(info, "vmem_capacity_bytes", None)
        if cap:
            return int(cap)
    except Exception:
        pass
    return 64 << 20  # v7x per-TC VMEM (smallest across supported generations)


def _choose_tiling(lead, num_freq, num_time, dtype_bytes, target_block_bytes,
                   want_even_grid):
    """Pick a lane-dense (l_blk, F, t_blk) tile of roughly target_block_bytes.

    Both grid axes use pl.cdiv (edge blocks are read-padded / write-masked), so
    there is no input padding and no divisor search.
    """
    # Time tile: full axis when it fits, otherwise a large multiple of 128 lanes.
    t128 = _round_up(max(num_time, 1), 128)
    col_bytes = num_freq * 128 * dtype_bytes
    n_cols = max(1, target_block_bytes // max(col_bytes, 1))
    t_blk = int(min(t128, n_cols * 128))
    if t_blk >= num_time:
        t_blk = num_time  # full axis: always layout-legal, no padded-only block
    t_grid = pl.cdiv(num_time, t_blk)

    # Lead tile: fill the remaining block budget (partial edge block is fine).
    slice_bytes = num_freq * t_blk * dtype_bytes
    l_blk = int(max(1, min(lead, target_block_bytes // max(slice_bytes, 1))))
    l_grid = pl.cdiv(lead, l_blk)

    # v7x megacore: prefer an even total number of grid steps so neither TC idles.
    if want_even_grid and (l_grid * t_grid) % 2 == 1 and l_grid < lead:
        l_blk = pl.cdiv(lead, l_grid + 1)
        l_grid = pl.cdiv(lead, l_blk)

    return l_blk, t_blk, l_grid, t_grid


# ---------------------------------------------------------------------------
# Wrapper: parameter sampling (glue) + pallas_call for the masking hot path.
# ---------------------------------------------------------------------------
class SpecAugmentationPallas:
    def __init__(self, freq_mask_param, time_mask_param,
                 num_freq_masks=1, num_time_masks=1):
        self.freq_mask_param = freq_mask_param
        self.time_mask_param = time_mask_param
        self.num_freq_masks = num_freq_masks
        self.num_time_masks = num_time_masks

    def _sample_mask_params(self, key, num_freq_bins, num_time_frames):
        """torchaudio.functional.mask_along_axis parameter sampling (trunc like .long())."""
        starts, ends = [], []
        for axis_size, mask_param, n in (
            (num_freq_bins, self.freq_mask_param, self.num_freq_masks),
            (num_time_frames, self.time_mask_param, self.num_time_masks),
        ):
            for _ in range(n):
                key, k1, k2 = jax.random.split(key, 3)
                value = jax.random.uniform(k1, ()) * mask_param
                min_value = jax.random.uniform(k2, ()) * (axis_size - value)
                mask_start = min_value.astype(jnp.int32)          # trunc toward 0
                mask_end = mask_start + value.astype(jnp.int32)   # torchaudio formula
                starts.append(mask_start)
                ends.append(mask_end)
        return jnp.stack(
            [jnp.stack(starts), jnp.stack(ends)], axis=-1
        ).astype(jnp.int32)  # [num_masks, 2]

    def _keep_vectors(self, params, num_freq, num_time):
        """Tiny per-axis keep vectors (O(F + T) work), computed once outside the kernel."""
        f_idx = jnp.arange(num_freq, dtype=jnp.int32)
        masked_f = jnp.zeros((num_freq,), dtype=jnp.bool_)
        for k in range(self.num_freq_masks):
            masked_f = masked_f | ((f_idx >= params[k, 0]) & (f_idx < params[k, 1]))

        t_idx = jnp.arange(num_time, dtype=jnp.int32)
        masked_t = jnp.zeros((num_time,), dtype=jnp.bool_)
        for k in range(self.num_time_masks):
            kk = self.num_freq_masks + k
            masked_t = masked_t | ((t_idx >= params[kk, 0]) & (t_idx < params[kk, 1]))

        keep_f = (~masked_f).astype(jnp.float32).reshape(num_freq, 1)
        keep_t = (~masked_t).astype(jnp.float32).reshape(1, num_time)
        return keep_f, keep_t

    def __call__(self, specgram, key):
        # specgram: (..., num_freq_bins, num_time_frames)
        orig_shape = specgram.shape
        num_freq, num_time = orig_shape[-2], orig_shape[-1]
        lead = 1
        for d in orig_shape[:-2]:
            lead *= d
        x = specgram.reshape(lead, num_freq, num_time)
        dtype_bytes = x.dtype.itemsize

        params = self._sample_mask_params(key, num_freq, num_time)
        keep_f, keep_t = self._keep_vectors(params, num_freq, num_time)

        vmem_cap = _vmem_capacity_bytes()
        big_vmem = vmem_cap >= (96 << 20)                 # v5e / v6e: 128 MiB VMEM
        target_block_bytes = (8 << 20) if big_vmem else (4 << 20)
        want_even_grid = not big_vmem                     # v7x: 2 TCs share the grid

        l_blk, t_blk, l_grid, t_grid = _choose_tiling(
            lead, num_freq, num_time, dtype_bytes, target_block_bytes, want_even_grid)

        block_bytes = l_blk * num_freq * t_blk * dtype_bytes
        vmem_limit = 4 * block_bytes + (4 << 20)          # in + out, double-buffered, + margin
        vmem_limit = int(max(16 << 20, min(vmem_limit, (vmem_cap * 3) // 4)))

        out = pl.pallas_call(
            _specaug_kernel,
            out_shape=jax.ShapeDtypeStruct(x.shape, x.dtype),
            grid=(l_grid, t_grid),
            in_specs=[
                pl.BlockSpec((num_freq, 1), lambda i, j: (0, 0)),
                pl.BlockSpec((1, t_blk), lambda i, j: (0, j)),
                pl.BlockSpec((l_blk, num_freq, t_blk), lambda i, j: (i, 0, j)),
            ],
            out_specs=pl.BlockSpec((l_blk, num_freq, t_blk), lambda i, j: (i, 0, j)),
            input_output_aliases={2: 0},  # donate the spectrogram into the output
            compiler_params=pltpu.CompilerParams(
                dimension_semantics=("parallel", "parallel"),
                vmem_limit_bytes=vmem_limit,
            ),
            cost_estimate=pl.CostEstimate(
                flops=int(x.size),
                transcendentals=0,
                bytes_accessed=int(2 * x.size * dtype_bytes),
            ),
        )(keep_f, keep_t, x)

        return out.reshape(orig_shape)


# ---------------------------------------------------------------------------
# Pure-JAX reference for a sanity check.
# ---------------------------------------------------------------------------
def _reference(specgram, params, num_freq_masks, num_time_masks):
    num_freq, num_time = specgram.shape[-2], specgram.shape[-1]
    f_idx = jnp.arange(num_freq)[:, None]
    t_idx = jnp.arange(num_time)[None, :]
    mask = jnp.zeros((num_freq, num_time), dtype=jnp.bool_)
    for k in range(num_freq_masks):
        mask = mask | ((f_idx >= params[k, 0]) & (f_idx < params[k, 1]))
    for k in range(num_time_masks):
        kk = num_freq_masks + k
        mask = mask | ((t_idx >= params[kk, 0]) & (t_idx < params[kk, 1]))
    return jnp.where(mask, 0.0, specgram)


if __name__ == "__main__":
    key = jax.random.PRNGKey(0)
    k_data, k_mask = jax.random.split(key)

    batch, channels, num_freq, num_time = 2, 4, 16, 16
    specgram = jax.random.normal(
        k_data, (batch, channels, num_freq, num_time), dtype=jnp.float32
    )

    aug = SpecAugmentationPallas(
        freq_mask_param=6, time_mask_param=6,
        num_freq_masks=1, num_time_masks=1,
    )

    # Reference with identical mask params, materialized before the aliased call.
    params = aug._sample_mask_params(k_mask, num_freq, num_time)
    ref = jax.block_until_ready(
        _reference(specgram, params, aug.num_freq_masks, aug.num_time_masks)
    )

    out = jax.block_until_ready(aug(specgram, k_mask))

    assert out.shape == specgram.shape
    assert jnp.allclose(out, ref), "Pallas output mismatch vs reference"
    print("KERNEL_OK")
</pallas_src>

<mosaic_0001>
module attributes {stable_mosaic.version = 11 : i64} {
  func.func @_specaug_kernel(%arg0: i32, %arg1: i32, %arg2: memref<16x1xf32, #tpu.memory_space<vmem>>, %arg3: memref<1x16xf32, #tpu.memory_space<vmem>>, %arg4: memref<4x16x16xf32, #tpu.memory_space<vmem>>, %arg5: memref<4x16x16xf32, #tpu.memory_space<vmem>>) attributes {dimension_semantics = [#tpu.dimension_semantics<parallel>, #tpu.dimension_semantics<parallel>], iteration_bounds = array<i64: 2, 1>, scalar_prefetch = 0 : i64, scratch_operands = 0 : i64, tpu.core_type = #tpu.core_type<tc>, window_params = [{pipeline_mode = #tpu.pipeline_mode<synchronous>, transform_indices = @transform_0, window_bounds = array<i64: 16, 1>}, {transform_indices = @transform_1, window_bounds = array<i64: 1, 16>}, {transform_indices = @transform_2, window_bounds = array<i64: 4, 16, 16>}, {transform_indices = @transform_3, window_bounds = array<i64: 4, 16, 16>}]} {
    %c0 = arith.constant 0 : index
    %c0_0 = arith.constant 0 : index
    %c0_1 = arith.constant 0 : index
    %0 = vector.load %arg4[%c0, %c0_0, %c0_1] : memref<4x16x16xf32, #tpu.memory_space<vmem>>, vector<4x16x16xf32>
    %c0_2 = arith.constant 0 : index
    %c0_3 = arith.constant 0 : index
    %1 = vector.load %arg2[%c0_2, %c0_3] : memref<16x1xf32, #tpu.memory_space<vmem>>, vector<16x1xf32>
    %cst = arith.constant 0.000000e+00 : f32
    %2 = vector.broadcast %cst : f32 to vector<16x1xf32>
    %3 = arith.cmpf one, %1, %2 : vector<16x1xf32>
    %c0_4 = arith.constant 0 : index
    %c0_5 = arith.constant 0 : index
    %4 = vector.load %arg3[%c0_4, %c0_5] : memref<1x16xf32, #tpu.memory_space<vmem>>, vector<1x16xf32>
    %cst_6 = arith.constant 0.000000e+00 : f32
    %5 = vector.broadcast %cst_6 : f32 to vector<1x16xf32>
    %6 = arith.cmpf one, %4, %5 : vector<1x16xf32>
    %7 = vector.broadcast %3 : vector<16x1xi1> to vector<16x16xi1>
    %8 = vector.broadcast %6 : vector<1x16xi1> to vector<16x16xi1>
    %9 = arith.andi %7, %8 : vector<16x16xi1>
    %cst_7 = arith.constant 0.000000e+00 : f32
    %10 = vector.shape_cast %9 : vector<16x16xi1> to vector<1x16x16xi1>
    %11 = vector.broadcast %10 : vector<1x16x16xi1> to vector<4x16x16xi1>
    %12 = vector.broadcast %cst_7 : f32 to vector<4x16x16xf32>
    %13 = arith.select %11, %0, %12 : vector<4x16x16xi1>, vector<4x16x16xf32>
    %c0_8 = arith.constant 0 : index
    %c0_9 = arith.constant 0 : index
    %c0_10 = arith.constant 0 : index
    %14 = vector.load %arg5[%c0_8, %c0_9, %c0_10] : memref<4x16x16xf32, #tpu.memory_space<vmem>>, vector<4x16x16xf32>
    tpu.vector_store %arg5[%c0_8, %c0_9, %c0_10], %13 {strides = array<i32>} : memref<4x16x16xf32, #tpu.memory_space<vmem>>, vector<4x16x16xf32>,
    return
  }
  func.func @transform_0(%arg0: i32, %arg1: i32) -> (i32, i32) {
    %c0_i32 = arith.constant 0 : i32
    %c0_i32_0 = arith.constant 0 : i32
    %c0_i32_1 = arith.constant 0 : i32
    return %c0_i32, %c0_i32_0 : i32, i32
  }
  func.func @transform_1(%arg0: i32, %arg1: i32) -> (i32, i32) {
    %c0_i32 = arith.constant 0 : i32
    %c0_i32_0 = arith.constant 0 : i32
    return %c0_i32, %arg1 : i32, i32
  }
  func.func @transform_2(%arg0: i32, %arg1: i32) -> (i32, i32, i32) {
    %c0_i32 = arith.constant 0 : i32
    %c0_i32_0 = arith.constant 0 : i32
    return %arg0, %c0_i32, %arg1 : i32, i32, i32
  }
  func.func @transform_3(%arg0: i32, %arg1: i32) -> (i32, i32, i32) {
    %c0_i32 = arith.constant 0 : i32
    %c0_i32_0 = arith.constant 0 : i32
    return %arg0, %c0_i32, %arg1 : i32, i32, i32
  }
}

</mosaic_0001>

<llo_original>
// kernel: tpu_custom_call.1
$region0: #{tpu_custom_call.1}
  #allocation0 [shape = 'u32[]', space=smem, size = 0x4, offset = 0x4, fixed_abs, tag = 'smem constant byte address 0x4 - core index']
  #allocation1 [shape = 'u32[144,128]{1,0:T(1,128)}', space=vmem, size = 0x12000, scoped, tag = 'internal scratch']
  %s0 = inlined_call_operand.vmem [shape: f32[16,1], index: 0, kind: input, shape index: {}]
  %s1 = inlined_call_operand.vmem [shape: f32[1,16], index: 1, kind: input, shape index: {}]
  %s2 = inlined_call_operand.hbm [shape: f32[8,16,16], index: 2, kind: input, shape index: {}, may-alias: {2,3}]
  %s3 = inlined_call_operand.hbm [shape: f32[8,16,16], index: 3, kind: output, shape index: {}, may-alias: {2,3}]
  %s4 = sld [smem:[#allocation0]]
  $region49: #{tpu_custom_call.1} parent=0
    _
  %s6 = ssub.s32 1, %s4
  %s7 = scalar_select 0, %s6, %s4
  $region1: #{tpu_custom_call.1} parent=0
    #allocation2 [shape = 'u8[65536]{0}', space=vmem, size = 0x10000, scoped, tag = 'input window, operand 2']
    #allocation3 [shape = 's32[2]{0}', space=sflag, size = 0x8, scoped, tag = 'scoped memory for tpu_custom_call.1']
    #allocation4 [shape = 's32[2]{0}', space=sflag, size = 0x8, scoped, tag = 'scoped memory for tpu_custom_call.1']
    #allocation5 [shape = 'u8[65536]{0}', space=vmem, size = 0x10000, scoped, tag = 'output window, operand 0']
    %8 = vsyncpa [#allocation3], 0
    %s9 = scalar_lea.sflag [#allocation3], 1
    %10 = vsyncpa %s9, 0
    %11 = vsyncpa [#allocation4], 0
    %s12 = scalar_lea.sflag [#allocation4], 1
    %13 = vsyncpa %s12, 0
    loop: start=0, step=1, limit=4
    $region2: #{tpu_custom_call.1} parent=1 // loop_pre_header
      _
    $region3: #{tpu_custom_call.1} parent=1 // loop_header
      %s15 = sphi 0, %s19
      %p16 = scmp.ge.s32.totalorder %s15, 4
      %s22 = sphi 0, %s34
      %s23 = sphi 0, %s30
      %s24 = sphi 0, %s22
      %s25 = sphi 0, %s23
      %s26 = sphi 0, %s24
      %s27 = sphi 0, %s25
      %s35 = sphi 0, %s35
      %s37 = sphi 0, %s35
      %s38 = sphi 0, %s37
      %s52 = sphi 0, %s38
      %s58 = sphi 0, %s60
      %s61 = sphi 0, %s58
      %s62 = sphi 0, %s61
      %s78 = sphi 0, %s62
      %s86 = sphi 0, %s88
      %s89 = sphi 0, %s86
      %s90 = sphi 0, %s89
      %s106 = sphi 0, %s90
      %s114 = sphi 0, %s116
      %s117 = sphi 0, %s114
      %s118 = sphi 0, %s117
      %s134 = sphi 0, %s118
    $region4: #{tpu_custom_call.1} parent=1 // loop_header_branch
      %18 = sbr.rel (%p16) target = $region8
    $region5: #{tpu_custom_call.1} parent=1 // loop_body
      %s20 = ssub.s32 %s15, 1
      %s21 = ssub.s32 %s15, 2
      %s28 = sadd.s32 1, %s23
      %p29 = scmp.ge.s32.totalorder %s28, 1
      %s30 = scalar_select %p29, 0, %s28
      %s31 = sadd.s32 1, %s22
      %s32 = scalar_select %p29, %s31, %s22
      %p33 = scmp.ge.s32.totalorder %s32, 2
      %s34 = scalar_select %p33, 0, %s32
      %s36 = sadd.s32 %s35, 1
      %p39 = scmp.eq.s32.totalorder %s15, 1
      %p40 = scmp.ne.s32.totalorder %s35, %s37
      %p41 = scmp.eq.s32.totalorder %s15, 0
      %p42 = por %p40, %p41
      %p43 = scmp.ne.s32.totalorder %s35, %s37
      %p44 = scmp.eq.s32.totalorder %s20, 1
      %p45 = por %p43, %p44
      %p46 = scmp.ne.s32.totalorder %s37, %s38
      %p47 = scmp.eq.s32.totalorder %s20, 0
      %p48 = por %p46, %p47
      %p49 = scmp.ne.s32.totalorder %s37, %s38
      %p50 = scmp.eq.s32.totalorder %s21, 1
      %p51 = por %p49, %p50
      %p53 = scmp.ne.s32.totalorder %s38, %s52
      %p54 = scmp.eq.s32.totalorder %s21, 0
      %p55 = por %p53, %p54
      %s56 = ssub.s32 %s23, %s30
      %p57 = scmp.eq.s32.totalorder %s56, 0
      %s59 = sadd.s32 %s58, 1
      %s60 = scalar_select %p57, %s58, %s59
      %p63 = pneg %p57
      %p64 = scmp.eq.s32.totalorder %s15, 1
      %p65 = por %p63, %p64
      %p66 = scmp.ne.s32.totalorder %s58, %s61
      %p67 = scmp.eq.s32.totalorder %s15, 0
      %p68 = por %p66, %p67
      %p69 = scmp.ne.s32.totalorder %s58, %s61
      %p70 = scmp.eq.s32.totalorder %s20, 1
      %p71 = por %p69, %p70
      %p72 = scmp.ne.s32.totalorder %s61, %s62
      %p73 = scmp.eq.s32.totalorder %s20, 0
      %p74 = por %p72, %p73
      %p75 = scmp.ne.s32.totalorder %s61, %s62
      %p76 = scmp.eq.s32.totalorder %s21, 1
      %p77 = por %p75, %p76
      %p79 = scmp.ne.s32.totalorder %s62, %s78
      %p80 = scmp.eq.s32.totalorder %s21, 0
      %p81 = por %p79, %p80
      %s82 = ssub.s32 %s22, %s34
      %s83 = ssub.s32 %s23, %s30
      %s84 = sor.u32 %s82, %s83
      %p85 = scmp.eq.s32.totalorder %s84, 0
      %s87 = sadd.s32 %s86, 1
      %s88 = scalar_select %p85, %s86, %s87
      %p91 = pneg %p85
      %p92 = scmp.eq.s32.totalorder %s15, 1
      %p93 = por %p91, %p92
      %p94 = scmp.ne.s32.totalorder %s86, %s89
      %p95 = scmp.eq.s32.totalorder %s15, 0
      %p96 = por %p94, %p95
      %p97 = scmp.ne.s32.totalorder %s86, %s89
      %p98 = scmp.eq.s32.totalorder %s20, 1
      %p99 = por %p97, %p98
      %p100 = scmp.ne.s32.totalorder %s89, %s90
      %p101 = scmp.eq.s32.totalorder %s20, 0
      %p102 = por %p100, %p101
      %p103 = scmp.ne.s32.totalorder %s89, %s90
      %p104 = scmp.eq.s32.totalorder %s21, 1
      %p105 = por %p103, %p104
      %p107 = scmp.ne.s32.totalorder %s90, %s106
      %p108 = scmp.eq.s32.totalorder %s21, 0
      %p109 = por %p107, %p108
      %s110 = ssub.s32 %s22, %s34
      %s111 = ssub.s32 %s23, %s30
      %s112 = sor.u32 %s110, %s111
      %p113 = scmp.eq.s32.totalorder %s112, 0
      %s115 = sadd.s32 %s114, 1
      %s116 = scalar_select %p113, %s114, %s115
      %p119 = pneg %p113
      %p120 = scmp.eq.s32.totalorder %s15, 1
      %p121 = por %p119, %p120
      %p122 = scmp.ne.s32.totalorder %s114, %s117
      %p123 = scmp.eq.s32.totalorder %s15, 0
      %p124 = por %p122, %p123
      %p125 = scmp.ne.s32.totalorder %s114, %s117
      %p126 = scmp.eq.s32.totalorder %s20, 1
      %p127 = por %p125, %p126
      %p128 = scmp.ne.s32.totalorder %s117, %s118
      %p129 = scmp.eq.s32.totalorder %s20, 0
      %p130 = por %p128, %p129
      %p131 = scmp.ne.s32.totalorder %s117, %s118
      %p132 = scmp.eq.s32.totalorder %s21, 1
      %p133 = por %p131, %p132
      %p135 = scmp.ne.s32.totalorder %s118, %s134
      %p136 = scmp.eq.s32.totalorder %s21, 0
      %p137 = por %p135, %p136
      %p138 = scmp.le.s32.totalorder 1, %s15
      %p139 = scmp.lt.s32.totalorder %s15, 3
      %p140 = pnand %p138, %p139
      %p141 = pneg %p140
      // Predicated region
      $region9: #{tpu_custom_call.1} parent=5 // pred_check
        _
      $region10: #{tpu_custom_call.1} parent=5 // pred_check_branch
        %143 = sbr.rel (%p140) target = $region12
      $region11: #{tpu_custom_call.1} parent=5 // pred_region
        %s144 = ssub.s32 %s15, 1
        // Predicated region
        $region13: #{tpu_custom_call.1} parent=11 // pred_check
          %p145 = pneg %p48
        $region14: #{tpu_custom_call.1} parent=11 // pred_check_branch
          %147 = sbr.rel (%p145) target = $region16
        $region15: #{tpu_custom_call.1} parent=11 // pred_region
          _
        $region16: #{tpu_custom_call.1} parent=11 // pred_fallthru
          _
        // Predicated region
        $region17: #{tpu_custom_call.1} parent=11 // pred_check
          %p148 = pneg %p74
        $region18: #{tpu_custom_call.1} parent=11 // pred_check_branch
          %150 = sbr.rel (%p148) target = $region20
        $region19: #{tpu_custom_call.1} parent=11 // pred_region
          %p151 = scmp.lt.s32.totalorder %s25, 0
          %s152 = scalar_select %p151, %s25, 0
          %s153 = scalar_lea.vmem %s1, %s152
        $region20: #{tpu_custom_call.1} parent=11 // pred_fallthru
          _
      $region12: #{tpu_custom_call.1} parent=5 // pred_fallthru
        _
      %p154 = scmp.lt.s32.totalorder %s15, 2
      // Predicated region
      $region21: #{tpu_custom_call.1} parent=5 // pred_check
        %p155 = pneg %p154
      $region22: #{tpu_custom_call.1} parent=5 // pred_check_branch
        %157 = sbr.rel (%p155) target = $region24
      $region23: #{tpu_custom_call.1} parent=5 // pred_region
        // Predicated region
        $region25: #{tpu_custom_call.1} parent=23 // pred_check
          %p158 = pneg %p96
        $region26: #{tpu_custom_call.1} parent=23 // pred_check_branch
          %160 = sbr.rel (%p158) target = $region28
        $region27: #{tpu_custom_call.1} parent=23 // pred_region
          %s161 = sand.u32 %s86, 1
          %s162 = scalar_lea.sflag [#allocation3], %s161
          %s163 = sand.u32 %s86, 1
          %s164 = smul.addr %s163, 64
          %s165 = scalar_lea.vmem [#allocation2], %s164
          %s166 = smul.u32 4, %s22
          %s168 = ssub.s32 1024, 1024
          %169 = vsyncadd %s162, %s168
          %s170 = smul.addr %s166, 2
          %s171 = sadd.s32 %s23, %s170
          %s172 = smul.addr %s171, 128
          %s173 = scalar_lea.hbm %s2, %s172
          %s174 = sshll.u32 %s165, 4
          %s175 = int_to_ptr.vmem [resolvable:$true] %s174
          %180 = dma.hbm_to_vmem [thread:$0]  %s173, 1024, %s175, %s162, 128, 128, 8
        $region28: #{tpu_custom_call.1} parent=23 // pred_fallthru
          _
      $region24: #{tpu_custom_call.1} parent=5 // pred_fallthru
        _
      %p181 = scmp.le.s32.totalorder 1, %s15
      %p182 = scmp.lt.s32.totalorder %s15, 3
      %p183 = pnand %p181, %p182
      %p184 = pneg %p183
      // Predicated region
      $region29: #{tpu_custom_call.1} parent=5 // pred_check
        _
      $region30: #{tpu_custom_call.1} parent=5 // pred_check_branch
        %186 = sbr.rel (%p183) target = $region32
      $region31: #{tpu_custom_call.1} parent=5 // pred_region
        %s187 = ssub.s32 %s15, 1
        %s188 = sand.u32 %s89, 1
        %s189 = scalar_lea.sflag [#allocation3], %s188
        %s190 = sand.u32 %s89, 1
        %s191 = smul.addr %s190, 64
        %s192 = scalar_lea.vmem [#allocation2], %s191
        // Predicated region
        $region33: #{tpu_custom_call.1} parent=31 // pred_check
          %p193 = pneg %p102
        $region34: #{tpu_custom_call.1} parent=31 // pred_check_branch
          %195 = sbr.rel (%p193) target = $region36
        $region35: #{tpu_custom_call.1} parent=31 // pred_region
          %196 = dma.done %s189, 1024
        $region36: #{tpu_custom_call.1} parent=31 // pred_fallthru
          _
        %p197 = pneg %p48
        %p198 = pneg %p45
        %p199 = scmp.lt.s32.totalorder %s25, 0
        %s200 = scalar_select %p199, %s25, 0
        %s201 = scalar_lea.vmem %s1, %s200
        %p202 = pneg %p74
        %p203 = pneg %p71
        %s204 = sand.u32 %s89, 1
        %s205 = scalar_lea.sflag [#allocation3], %s204
        %s206 = sand.u32 %s89, 1
        %s207 = smul.addr %s206, 64
        %s208 = scalar_lea.vmem [#allocation2], %s207
        %p209 = pneg %p102
        %p210 = pneg %p99
        %p211 = pneg %p130
        %p212 = pneg %p127
        %s213 = sand.u32 %s117, 1
        %s214 = scalar_lea.sflag [#allocation4], %s213
        %s215 = sand.u32 %s117, 1
        %s216 = smul.addr %s215, 64
        %s217 = scalar_lea.vmem [#allocation5], %s216
        %p218 = scmp.lt.s32.totalorder %s25, 0
        %s219 = scalar_select %p218, %s25, 0
        %s220 = scalar_lea.vmem %s1, %s219
        %s221 = smul.u32 4, %s24
        %s222 = smul.u32 4, %s24
        %v223 = vld [vmem:[%s192] sm:$0xff]
        %v224 = vld [vmem:[%s192 + $0x8] sm:$0xff]
        %v225 = vld [vmem:[%s192 + $0x10] sm:$0xff]
        %v226 = vld [vmem:[%s192 + $0x18] sm:$0xff]
        %v227 = vld [vmem:[%s192 + $0x20] sm:$0xff]
        %v228 = vld [vmem:[%s192 + $0x28] sm:$0xff]
        %v229 = vld [vmem:[%s192 + $0x30] sm:$0xff]
        %v230 = vld [vmem:[%s192 + $0x38] sm:$0xff]
        %v231 = vld [vmem:[%s0] sm:$0xff]
        %v232 = vld [vmem:[%s0 + $0x8] sm:$0xff]
        %vm233 = vcmp.ne.f32.partialorder %v231, 0.0
        %vm234 = vcmp.ne.f32.partialorder %v232, 0.0
        %v235 = vld [vmem:[%s220] sm:$0x1]
        %vm236 = vcmp.ne.f32.partialorder %v235, 0.0
        %v237 = vsel %vm233, 1, 0
        %v238 = vsel %vm234, 1, 0
        %239 = vset.pattern.permute.xlu0 0
        %240 = vperm.xlu0 %239, %v237
        %v241 = vpop.permute.xlu0 %240
        %242 = vset.pattern.permute.xlu0 0
        %243 = vperm.xlu0 %242, %v238
        %v244 = vpop.permute.xlu0 %243
        %vm245 = vcmp.eq.s32.totalorder %v241, 1
        %vm246 = vcmp.eq.s32.totalorder %v244, 1
        %v247 = vsel %vm236, 1, 0
        %v248 = vlaneseq
        %v249 = vshrl.u32 %v248, 7
        %v250 = vsub.s32 0, %v249
        %v251 = vrot.slane %v247, %v250
        %vm252 = vcmp.eq.s32.totalorder %v251, 1
        %vm253 = vmand %vm245, %vm252
        %vm254 = vmand %vm246, %vm252
        %v255 = vsel %vm253, 1, 0
        %v256 = vsel %vm254, 1, 0
        %vm257 = vcmp.eq.s32.totalorder %v255, 1
        %vm258 = vcmp.eq.s32.totalorder %v256, 1
        %v259 = vsel %vm257, %v223, 0.0
        %v260 = vsel %vm258, %v224, 0.0
        %v261 = vsel %vm257, %v225, 0.0
        %v262 = vsel %vm258, %v226, 0.0
        %v263 = vsel %vm257, %v227, 0.0
        %v264 = vsel %vm258, %v228, 0.0
        %v265 = vsel %vm257, %v229, 0.0
        %v266 = vsel %vm258, %v230, 0.0
        %vm267 = vcmask 130048
        %268 = vst.msk [vmem:[%s217] sm:$0xff] %vm267, %v259
        %269 = vst.msk [vmem:[%s217 + $0x8] sm:$0xff] %vm267, %v260
        %270 = vst.msk [vmem:[%s217 + $0x10] sm:$0xff] %vm267, %v261
        %271 = vst.msk [vmem:[%s217 + $0x18] sm:$0xff] %vm267, %v262
        %272 = vst.msk [vmem:[%s217 + $0x20] sm:$0xff] %vm267, %v263
        %273 = vst.msk [vmem:[%s217 + $0x28] sm:$0xff] %vm267, %v264
        %274 = vst.msk [vmem:[%s217 + $0x30] sm:$0xff] %vm267, %v265
        %275 = vst.msk [vmem:[%s217 + $0x38] sm:$0xff] %vm267, %v266
        %s276 = sand.u32 %s117, 1
        %s277 = scalar_lea.sflag [#allocation4], %s276
        %s278 = sand.u32 %s117, 1
        %s279 = smul.addr %s278, 64
        %s280 = scalar_lea.vmem [#allocation5], %s279
        // Predicated region
        $region37: #{tpu_custom_call.1} parent=31 // pred_check
          %p281 = pneg %p127
        $region38: #{tpu_custom_call.1} parent=31 // pred_check_branch
          %283 = sbr.rel (%p281) target = $region40
        $region39: #{tpu_custom_call.1} parent=31 // pred_region
          %s284 = smul.u32 4, %s24
          %s286 = ssub.s32 1024, 1024
          %287 = vsyncadd %s277, %s286
          %s288 = smul.addr %s284, 2
          %s289 = sadd.s32 %s25, %s288
          %s290 = smul.addr %s289, 128
          %s291 = scalar_lea.hbm %s3, %s290
          %s292 = sshll.u32 %s280, 4
          %s293 = int_to_ptr.vmem [resolvable:$true] %s292
          %298 = dma.vmem_to_hbm [thread:$0]  %s293, 1024, %s291, %s277, 128, 128, 8
        $region40: #{tpu_custom_call.1} parent=31 // pred_fallthru
          _
      $region32: #{tpu_custom_call.1} parent=5 // pred_fallthru
        _
      %p299 = scmp.le.s32.totalorder 2, %s15
      // Predicated region
      $region41: #{tpu_custom_call.1} parent=5 // pred_check
        %p300 = pneg %p299
      $region42: #{tpu_custom_call.1} parent=5 // pred_check_branch
        %302 = sbr.rel (%p300) target = $region44
      $region43: #{tpu_custom_call.1} parent=5 // pred_region
        %s303 = ssub.s32 %s15, 2
        // Predicated region
        $region45: #{tpu_custom_call.1} parent=43 // pred_check
          %p304 = pneg %p133
        $region46: #{tpu_custom_call.1} parent=43 // pred_check_branch
          %306 = sbr.rel (%p304) target = $region48
        $region47: #{tpu_custom_call.1} parent=43 // pred_region
          %s307 = sand.u32 %s118, 1
          %s308 = scalar_lea.sflag [#allocation4], %s307
          %s309 = sand.u32 %s118, 1
          %s310 = smul.addr %s309, 64
          %s311 = scalar_lea.vmem [#allocation5], %s310
          %312 = dma.done %s308, 1024
        $region48: #{tpu_custom_call.1} parent=43 // pred_fallthru
          _
      $region44: #{tpu_custom_call.1} parent=5 // pred_fallthru
        _
    $region6: #{tpu_custom_call.1} parent=1 // loop_footer
      %s19 = sadd.s32 1, %s15
    $region7: #{tpu_custom_call.1} parent=1 // loop_footer_branch
      %14 = sbr.rel target = $region3
    $region8: #{tpu_custom_call.1} parent=1 // loop_exit
      _
    %313 = vsyncpa [#allocation3], 1
    %s314 = scalar_lea.sflag [#allocation3], 1
    %315 = vsyncpa %s314, 1
    %316 = vsyncpa [#allocation4], 1
    %s317 = scalar_lea.sflag [#allocation4], 1
    %318 = vsyncpa %s317, 1

</llo_original>
